<compile_context>
chip_gen: v7x
topology: tpu7x:2x2x1
jax: 0.10.0
libtpu: 0.0.40
codegen_flags: <defaults>
</compile_context>

<pallas_src>
import jax
import jax.numpy as jnp
from jax import lax
from jax.experimental import pallas as pl
from jax.experimental.pallas import tpu as pltpu


def _joint_encoder_kernel(x_ref, wc_ref, b0_ref, w1_ref, b1_ref,
                          w2l_ref, b2l_ref, w2s_ref, b2s_ref,
                          loc_ref, scale_ref, xpad_ref):
    # Per grid step (grid over batch blocks):
    #   x_ref    : (BB, T, F)      raw (unpadded) input block
    #   wc_ref   : (W*F, H0)       im2col conv weight, row index = tap*F + feat
    #   b0_ref   : (1, H0)
    #   w1_ref   : (H0, H1), b1_ref: (1, H1)
    #   w2l_ref  : (H1, Z),  b2l_ref: (1, Z)    dense2 "loc" half
    #   w2s_ref  : (H1, Z),  b2s_ref: (1, Z)    dense2 "scale" half
    #   loc_ref, scale_ref : (BB, T, Z)         lane-contiguous output slabs
    #   xpad_ref : (BB, T + W - 1, F) VMEM scratch for the 'same' halo
    BB, T, F = x_ref.shape
    Tp = xpad_ref.shape[1]
    W = Tp - T + 1
    Z = loc_ref.shape[2]
    left = (W - 1) // 2  # PyTorch padding='same' (stride 1): left = (W-1)//2

    # Build the zero-padded block in VMEM (zero every step: with "parallel"
    # semantics each core owns its own scratch, so a program_id==0 init would
    # leave the second core's halo uninitialized).
    xpad_ref[...] = jnp.zeros_like(xpad_ref)
    xpad_ref[:, left:left + T, :] = x_ref[...]
    xp = xpad_ref[...]                                   # (BB, Tp, F)

    # im2col: W shifted slices concatenated tap-major -> single MXU matmul.
    cols = jnp.concatenate([xp[:, k:k + T, :] for k in range(W)], axis=-1)
    lhs = cols.reshape(BB * T, W * F)                    # (BB*T, W*F)

    # Conv1d(padding='same') + bias (no activation after conv, as in the ref).
    h0 = jnp.dot(lhs, wc_ref[...], preferred_element_type=jnp.float32) + b0_ref[...]
    # dense1 + relu
    h1 = jnp.maximum(
        jnp.dot(h0, w1_ref[...], preferred_element_type=jnp.float32) + b1_ref[...],
        0.0)
    # dense2 (split into loc / scale halves) + relu, then softplus on scale.
    loc = jnp.maximum(
        jnp.dot(h1, w2l_ref[...], preferred_element_type=jnp.float32) + b2l_ref[...],
        0.0)
    sca = jnp.maximum(
        jnp.dot(h1, w2s_ref[...], preferred_element_type=jnp.float32) + b2s_ref[...],
        0.0)

    loc_ref[...] = loc.reshape(BB, T, Z)
    scale_ref[...] = jax.nn.softplus(sca).reshape(BB, T, Z)


def _pick_block_b(B, T, block_b=None):
    """Batch-block size: aim for ~256 rows in the flattened M dim, but keep the
    grid length >= 2 when B allows so v7x can use both TensorCores."""
    if block_b is not None:
        assert B % block_b == 0, "block_b must divide the batch size"
        return block_b
    target = max(1, 256 // max(T, 1))
    bb = 1
    for d in range(1, B + 1):
        if B % d == 0 and d <= target:
            bb = d
    if B // bb < 2 and B > 1:
        for d in range(B // 2, 0, -1):
            if B % d == 0:
                bb = d
                break
    return bb


def joint_encoder_forward(x, params, *, z_size, window_size, block_b=None):
    """x: (B, T, F) float32.  Returns (loc, scale), each (B, z_size, T)."""
    B, T, F = x.shape
    W = window_size
    Tp = T + W - 1
    Z = z_size

    wc, b0, w1, b1, w2, b2 = (params["wc"], params["b0"], params["w1"],
                              params["b1"], params["w2"], params["b2"])
    H0 = wc.shape[2]
    H1 = w1.shape[1]
    assert w2.shape[1] == 2 * Z

    # im2col weight: (W, F, H0) -> (W*F, H0), row index = tap*F + feature.
    wc2 = wc.reshape(W * F, H0)
    # Pre-split dense2 so the kernel never transposes or slices sub-tile
    # sublane ranges.
    w2l, w2s = w2[:, :Z], w2[:, Z:]
    b2l, b2s = b2[:, :Z], b2[:, Z:]

    BB = _pick_block_b(B, T, block_b)
    grid = (B // BB,)

    full = lambda shape: pl.BlockSpec(shape, lambda b: (0,) * len(shape))

    # Explicit VMEM budget: double-buffered I/O blocks + resident weights +
    # padded scratch, clamped to a value safe on v5e/v6e (128 MiB) and v7x (64 MiB).
    est = 4 * (2 * BB * T * F                       # input block (double-buffered)
               + 4 * BB * T * Z                     # two output blocks (double-buffered)
               + BB * Tp * F                        # padded scratch
               + 2 * (W * F * H0 + H0 + H0 * H1 + H1 + 2 * H1 * Z + 2 * Z))
    vmem_limit = int(min(32 << 20, max(16 << 20, 2 * est)))

    loc_btz, scale_btz = pl.pallas_call(
        _joint_encoder_kernel,
        out_shape=(jax.ShapeDtypeStruct((B, T, Z), jnp.float32),
                   jax.ShapeDtypeStruct((B, T, Z), jnp.float32)),
        grid=grid,
        in_specs=[
            pl.BlockSpec((BB, T, F), lambda b: (b, 0, 0)),   # unpadded input block
            full((W * F, H0)),                               # im2col conv weight
            full((1, H0)),                                   # conv bias
            full((H0, H1)),                                  # dense1 weight
            full((1, H1)),                                   # dense1 bias
            full((H1, Z)),                                   # dense2 loc weight
            full((1, Z)),                                    # dense2 loc bias
            full((H1, Z)),                                   # dense2 scale weight
            full((1, Z)),                                    # dense2 scale bias
        ],
        out_specs=(pl.BlockSpec((BB, T, Z), lambda b: (b, 0, 0)),
                   pl.BlockSpec((BB, T, Z), lambda b: (b, 0, 0))),
        scratch_shapes=[pltpu.VMEM((BB, Tp, F), jnp.float32)],
        compiler_params=pltpu.CompilerParams(
            dimension_semantics=("parallel",),
            vmem_limit_bytes=vmem_limit),
    )(x, wc2, b0, w1, b1, w2l, b2l, w2s, b2s)

    # Kernel writes (B, T, Z); the module's output convention is (B, Z, T).
    return jnp.swapaxes(loc_btz, 1, 2), jnp.swapaxes(scale_btz, 1, 2)


def init_params(key, *, n_features, hidden_sizes, window_size, z_size):
    """Deterministic synthetic parameters (module __init__ gives the shapes)."""
    H0, H1 = hidden_sizes
    k = jax.random.split(key, 6)
    # PyTorch Conv1d weight: (H0, n_features, W) -> store tap-major (W, F, H0)
    conv_w = 0.1 * jax.random.normal(k[0], (H0, n_features, window_size), jnp.float32)
    conv_b = 0.1 * jax.random.normal(k[1], (H0,), jnp.float32)
    # PyTorch Linear weight: (out, in) -> store transposed (in, out)
    d1_w = 0.1 * jax.random.normal(k[2], (H1, H0), jnp.float32)
    d1_b = 0.1 * jax.random.normal(k[3], (H1,), jnp.float32)
    d2_w = 0.1 * jax.random.normal(k[4], (2 * z_size, H1), jnp.float32)
    d2_b = 0.1 * jax.random.normal(k[5], (2 * z_size,), jnp.float32)
    return {
        "wc": jnp.transpose(conv_w, (2, 1, 0)),   # (W, F, H0)
        "b0": conv_b.reshape(1, H0),
        "w1": d1_w.T,                              # (H0, H1)
        "b1": d1_b.reshape(1, H1),
        "w2": d2_w.T,                              # (H1, 2Z)
        "b2": d2_b.reshape(1, 2 * z_size),
    }


def reference_forward(x, params, *, z_size, window_size):
    """Pure-JAX reference using lax.conv_general_dilated (independent of kernel)."""
    W = window_size
    left = (W - 1) // 2
    right = (W - 1) - left
    # x: (B, T, F) = NWC; weight wc: (W, F, H0) = WIO
    h0 = lax.conv_general_dilated(
        x, params["wc"], window_strides=(1,), padding=[(left, right)],
        dimension_numbers=("NWC", "WIO", "NWC")) + params["b0"]
    h1 = jax.nn.relu(h0 @ params["w1"] + params["b1"])
    h2 = jax.nn.relu(h1 @ params["w2"] + params["b2"])   # (B, T, 2Z)
    h2t = jnp.swapaxes(h2, 1, 2)                          # (B, 2Z, T)
    loc = h2t[:, :z_size, :]
    scale = jax.nn.softplus(h2t[:, z_size:, :])
    return loc, scale


if __name__ == "__main__":
    # Small shapes consistent with the module's forward.
    B, T = 4, 16
    n_features = 6
    hidden_sizes = (32, 32)
    window_size = 8
    z_size = 4

    key = jax.random.PRNGKey(0)
    kx, kp = jax.random.split(key)
    x = jax.random.normal(kx, (B, T, n_features), jnp.float32)   # (B, T, F)
    params = init_params(kp, n_features=n_features, hidden_sizes=hidden_sizes,
                         window_size=window_size, z_size=z_size)

    loc, scale = joint_encoder_forward(x, params, z_size=z_size,
                                       window_size=window_size)
    loc = jax.block_until_ready(loc)
    scale = jax.block_until_ready(scale)

    ref_loc, ref_scale = reference_forward(x, params, z_size=z_size,
                                           window_size=window_size)
    assert loc.shape == (B, z_size, T) and scale.shape == (B, z_size, T)
    assert jnp.allclose(loc, ref_loc, atol=1e-4, rtol=1e-4)
    assert jnp.allclose(scale, ref_scale, atol=1e-4, rtol=1e-4)

    print("KERNEL_OK")
</pallas_src>

<mosaic_0001>
module attributes {stable_mosaic.version = 11 : i64} {
  func.func @_joint_encoder_kernel(%arg0: i32, %arg1: memref<2x16x6xf32, #tpu.memory_space<vmem>>, %arg2: memref<48x32xf32, #tpu.memory_space<vmem>>, %arg3: memref<1x32xf32, #tpu.memory_space<vmem>>, %arg4: memref<32x32xf32, #tpu.memory_space<vmem>>, %arg5: memref<1x32xf32, #tpu.memory_space<vmem>>, %arg6: memref<32x4xf32, #tpu.memory_space<vmem>>, %arg7: memref<1x4xf32, #tpu.memory_space<vmem>>, %arg8: memref<32x4xf32, #tpu.memory_space<vmem>>, %arg9: memref<1x4xf32, #tpu.memory_space<vmem>>, %arg10: memref<2x16x4xf32, #tpu.memory_space<vmem>>, %arg11: memref<2x16x4xf32, #tpu.memory_space<vmem>>, %arg12: memref<2x23x6xf32, #tpu.memory_space<vmem>>) attributes {dimension_semantics = [#tpu.dimension_semantics<parallel>], iteration_bounds = array<i64: 2>, scalar_prefetch = 0 : i64, scratch_operands = 1 : i64, tpu.core_type = #tpu.core_type<tc>, window_params = [{transform_indices = @transform_0, window_bounds = array<i64: 2, 16, 6>}, {pipeline_mode = #tpu.pipeline_mode<synchronous>, transform_indices = @transform_1, window_bounds = array<i64: 48, 32>}, {pipeline_mode = #tpu.pipeline_mode<synchronous>, transform_indices = @transform_2, window_bounds = array<i64: 1, 32>}, {pipeline_mode = #tpu.pipeline_mode<synchronous>, transform_indices = @transform_3, window_bounds = array<i64: 32, 32>}, {pipeline_mode = #tpu.pipeline_mode<synchronous>, transform_indices = @transform_4, window_bounds = array<i64: 1, 32>}, {pipeline_mode = #tpu.pipeline_mode<synchronous>, transform_indices = @transform_5, window_bounds = array<i64: 32, 4>}, {pipeline_mode = #tpu.pipeline_mode<synchronous>, transform_indices = @transform_6, window_bounds = array<i64: 1, 4>}, {pipeline_mode = #tpu.pipeline_mode<synchronous>, transform_indices = @transform_7, window_bounds = array<i64: 32, 4>}, {pipeline_mode = #tpu.pipeline_mode<synchronous>, transform_indices = @transform_8, window_bounds = array<i64: 1, 4>}, {transform_indices = @transform_9, window_bounds = array<i64: 2, 16, 4>}, {transform_indices = @transform_10, window_bounds = array<i64: 2, 16, 4>}]} {
    %cst = arith.constant 0.000000e+00 : f32
    %0 = vector.broadcast %cst : f32 to vector<2x23x6xf32>
    %c0 = arith.constant 0 : index
    %c0_0 = arith.constant 0 : index
    %c0_1 = arith.constant 0 : index
    %1 = vector.load %arg12[%c0, %c0_0, %c0_1] : memref<2x23x6xf32, #tpu.memory_space<vmem>>, vector<2x23x6xf32>
    tpu.vector_store %arg12[%c0, %c0_0, %c0_1], %0 {strides = array<i32>} : memref<2x23x6xf32, #tpu.memory_space<vmem>>, vector<2x23x6xf32>,
    %c0_2 = arith.constant 0 : index
    %c0_3 = arith.constant 0 : index
    %c0_4 = arith.constant 0 : index
    %2 = vector.load %arg1[%c0_2, %c0_3, %c0_4] : memref<2x16x6xf32, #tpu.memory_space<vmem>>, vector<2x16x6xf32>
    %c0_5 = arith.constant 0 : index
    %c3 = arith.constant 3 : index
    %c0_6 = arith.constant 0 : index
    %3 = vector.load %arg12[%c0_5, %c3, %c0_6] : memref<2x23x6xf32, #tpu.memory_space<vmem>>, vector<2x16x6xf32>
    tpu.vector_store %arg12[%c0_5, %c3, %c0_6], %2 {strides = array<i32>} : memref<2x23x6xf32, #tpu.memory_space<vmem>>, vector<2x16x6xf32>,
    %c0_7 = arith.constant 0 : index
    %c0_8 = arith.constant 0 : index
    %c0_9 = arith.constant 0 : index
    %4 = vector.load %arg12[%c0_7, %c0_8, %c0_9] : memref<2x23x6xf32, #tpu.memory_space<vmem>>, vector<2x23x6xf32>
    %5 = vector.extract_strided_slice %4 {offsets = [0, 0, 0], sizes = [2, 16, 6], strides = [1, 1, 1]} : vector<2x23x6xf32> to vector<2x16x6xf32>
    %6 = vector.extract_strided_slice %4 {offsets = [0, 1, 0], sizes = [2, 16, 6], strides = [1, 1, 1]} : vector<2x23x6xf32> to vector<2x16x6xf32>
    %7 = vector.extract_strided_slice %4 {offsets = [0, 2, 0], sizes = [2, 16, 6], strides = [1, 1, 1]} : vector<2x23x6xf32> to vector<2x16x6xf32>
    %8 = vector.extract_strided_slice %4 {offsets = [0, 3, 0], sizes = [2, 16, 6], strides = [1, 1, 1]} : vector<2x23x6xf32> to vector<2x16x6xf32>
    %9 = vector.extract_strided_slice %4 {offsets = [0, 4, 0], sizes = [2, 16, 6], strides = [1, 1, 1]} : vector<2x23x6xf32> to vector<2x16x6xf32>
    %10 = vector.extract_strided_slice %4 {offsets = [0, 5, 0], sizes = [2, 16, 6], strides = [1, 1, 1]} : vector<2x23x6xf32> to vector<2x16x6xf32>
    %11 = vector.extract_strided_slice %4 {offsets = [0, 6, 0], sizes = [2, 16, 6], strides = [1, 1, 1]} : vector<2x23x6xf32> to vector<2x16x6xf32>
    %12 = vector.extract_strided_slice %4 {offsets = [0, 7, 0], sizes = [2, 16, 6], strides = [1, 1, 1]} : vector<2x23x6xf32> to vector<2x16x6xf32>
    %13 = tpu.concatenate %5, %6, %7, %8, %9, %10, %11, %12 in 2 : vector<2x16x6xf32>, vector<2x16x6xf32>, vector<2x16x6xf32>, vector<2x16x6xf32>, vector<2x16x6xf32>, vector<2x16x6xf32>, vector<2x16x6xf32>, vector<2x16x6xf32> -> vector<2x16x48xf32>
    %14 = vector.shape_cast %13 : vector<2x16x48xf32> to vector<32x48xf32>
    %c0_10 = arith.constant 0 : index
    %c0_11 = arith.constant 0 : index
    %15 = vector.load %arg2[%c0_10, %c0_11] : memref<48x32xf32, #tpu.memory_space<vmem>>, vector<48x32xf32>
    %cst_12 = arith.constant dense<0.000000e+00> : vector<32x32xf32>
    %16 = tpu.matmul %14, %15, %cst_12 {dimension_numbers = #tpu.dot_dimension_numbers<[1], [0], [0], [1], [0, 0, 1, 1], [], []>} : vector<32x48xf32>, vector<48x32xf32>, vector<32x32xf32> -> vector<32x32xf32>
    %c0_13 = arith.constant 0 : index
    %c0_14 = arith.constant 0 : index
    %17 = vector.load %arg3[%c0_13, %c0_14] : memref<1x32xf32, #tpu.memory_space<vmem>>, vector<1x32xf32>
    %18 = vector.broadcast %17 : vector<1x32xf32> to vector<32x32xf32>
    %19 = arith.addf %16, %18 : vector<32x32xf32>
    %c0_15 = arith.constant 0 : index
    %c0_16 = arith.constant 0 : index
    %20 = vector.load %arg4[%c0_15, %c0_16] : memref<32x32xf32, #tpu.memory_space<vmem>>, vector<32x32xf32>
    %cst_17 = arith.constant dense<0.000000e+00> : vector<32x32xf32>
    %21 = tpu.matmul %19, %20, %cst_17 {dimension_numbers = #tpu.dot_dimension_numbers<[1], [0], [0], [1], [0, 0, 1, 1], [], []>} : vector<32x32xf32>, vector<32x32xf32>, vector<32x32xf32> -> vector<32x32xf32>
    %c0_18 = arith.constant 0 : index
    %c0_19 = arith.constant 0 : index
    %22 = vector.load %arg5[%c0_18, %c0_19] : memref<1x32xf32, #tpu.memory_space<vmem>>, vector<1x32xf32>
    %23 = vector.broadcast %22 : vector<1x32xf32> to vector<32x32xf32>
    %24 = arith.addf %21, %23 : vector<32x32xf32>
    %cst_20 = arith.constant 0.000000e+00 : f32
    %25 = vector.broadcast %cst_20 : f32 to vector<32x32xf32>
    %26 = arith.maximumf %24, %25 : vector<32x32xf32>
    %c0_21 = arith.constant 0 : index
    %c0_22 = arith.constant 0 : index
    %27 = vector.load %arg6[%c0_21, %c0_22] : memref<32x4xf32, #tpu.memory_space<vmem>>, vector<32x4xf32>
    %cst_23 = arith.constant dense<0.000000e+00> : vector<32x4xf32>
    %28 = tpu.matmul %26, %27, %cst_23 {dimension_numbers = #tpu.dot_dimension_numbers<[1], [0], [0], [1], [0, 0, 1, 1], [], []>} : vector<32x32xf32>, vector<32x4xf32>, vector<32x4xf32> -> vector<32x4xf32>
    %c0_24 = arith.constant 0 : index
    %c0_25 = arith.constant 0 : index
    %29 = vector.load %arg7[%c0_24, %c0_25] : memref<1x4xf32, #tpu.memory_space<vmem>>, vector<1x4xf32>
    %30 = vector.broadcast %29 : vector<1x4xf32> to vector<32x4xf32>
    %31 = arith.addf %28, %30 : vector<32x4xf32>
    %cst_26 = arith.constant 0.000000e+00 : f32
    %32 = vector.broadcast %cst_26 : f32 to vector<32x4xf32>
    %33 = arith.maximumf %31, %32 : vector<32x4xf32>
    %c0_27 = arith.constant 0 : index
    %c0_28 = arith.constant 0 : index
    %34 = vector.load %arg8[%c0_27, %c0_28] : memref<32x4xf32, #tpu.memory_space<vmem>>, vector<32x4xf32>
    %cst_29 = arith.constant dense<0.000000e+00> : vector<32x4xf32>
    %35 = tpu.matmul %26, %34, %cst_29 {dimension_numbers = #tpu.dot_dimension_numbers<[1], [0], [0], [1], [0, 0, 1, 1], [], []>} : vector<32x32xf32>, vector<32x4xf32>, vector<32x4xf32> -> vector<32x4xf32>
    %c0_30 = arith.constant 0 : index
    %c0_31 = arith.constant 0 : index
    %36 = vector.load %arg9[%c0_30, %c0_31] : memref<1x4xf32, #tpu.memory_space<vmem>>, vector<1x4xf32>
    %37 = vector.broadcast %36 : vector<1x4xf32> to vector<32x4xf32>
    %38 = arith.addf %35, %37 : vector<32x4xf32>
    %cst_32 = arith.constant 0.000000e+00 : f32
    %39 = vector.broadcast %cst_32 : f32 to vector<32x4xf32>
    %40 = arith.maximumf %38, %39 : vector<32x4xf32>
    %41 = vector.shape_cast %33 : vector<32x4xf32> to vector<2x16x4xf32>
    %c0_33 = arith.constant 0 : index
    %c0_34 = arith.constant 0 : index
    %c0_35 = arith.constant 0 : index
    %42 = vector.load %arg10[%c0_33, %c0_34, %c0_35] : memref<2x16x4xf32, #tpu.memory_space<vmem>>, vector<2x16x4xf32>
    tpu.vector_store %arg10[%c0_33, %c0_34, %c0_35], %41 {strides = array<i32>} : memref<2x16x4xf32, #tpu.memory_space<vmem>>, vector<2x16x4xf32>,
    %cst_36 = arith.constant 0.000000e+00 : f32
    %43 = vector.broadcast %cst_36 : f32 to vector<32x4xf32>
    %44 = arith.maximumf %40, %43 : vector<32x4xf32>
    %45 = vector.broadcast %cst_36 : f32 to vector<32x4xf32>
    %46 = arith.subf %40, %45 : vector<32x4xf32>
    %47 = arith.cmpf one, %46, %46 : vector<32x4xf32>
    %48 = vector.broadcast %cst_36 : f32 to vector<32x4xf32>
    %49 = arith.addf %40, %48 : vector<32x4xf32>
    %50 = math.absf %46 : vector<32x4xf32>
    %cst_37 = arith.constant 0.000000e+00 : f32
    %51 = vector.broadcast %cst_37 : f32 to vector<32x4xf32>
    %52 = arith.subf %51, %50 : vector<32x4xf32>
    %53 = math.exp %52 : vector<32x4xf32>
    %54 = math.log1p %53 : vector<32x4xf32>
    %55 = arith.addf %44, %54 : vector<32x4xf32>
    %56 = arith.select %47, %49, %55 : vector<32x4xi1>, vector<32x4xf32>
    %57 = vector.shape_cast %56 : vector<32x4xf32> to vector<2x16x4xf32>
    %c0_38 = arith.constant 0 : index
    %c0_39 = arith.constant 0 : index
    %c0_40 = arith.constant 0 : index
    %58 = vector.load %arg11[%c0_38, %c0_39, %c0_40] : memref<2x16x4xf32, #tpu.memory_space<vmem>>, vector<2x16x4xf32>
    tpu.vector_store %arg11[%c0_38, %c0_39, %c0_40], %57 {strides = array<i32>} : memref<2x16x4xf32, #tpu.memory_space<vmem>>, vector<2x16x4xf32>,
    return
  }
  func.func @transform_0(%arg0: i32) -> (i32, i32, i32) {
    %c0_i32 = arith.constant 0 : i32
    %c0_i32_0 = arith.constant 0 : i32
    %c0_i32_1 = arith.constant 0 : i32
    return %arg0, %c0_i32, %c0_i32_0 : i32, i32, i32
  }
  func.func @transform_1(%arg0: i32) -> (i32, i32) {
    %c0_i32 = arith.constant 0 : i32
    %c0_i32_0 = arith.constant 0 : i32
    %c0_i32_1 = arith.constant 0 : i32
    return %c0_i32, %c0_i32_0 : i32, i32
  }
  func.func @transform_2(%arg0: i32) -> (i32, i32) {
    %c0_i32 = arith.constant 0 : i32
    %c0_i32_0 = arith.constant 0 : i32
    %c0_i32_1 = arith.constant 0 : i32
    return %c0_i32, %c0_i32_0 : i32, i32
  }
  func.func @transform_3(%arg0: i32) -> (i32, i32) {
    %c0_i32 = arith.constant 0 : i32
    %c0_i32_0 = arith.constant 0 : i32
    %c0_i32_1 = arith.constant 0 : i32
    return %c0_i32, %c0_i32_0 : i32, i32
  }
  func.func @transform_4(%arg0: i32) -> (i32, i32) {
    %c0_i32 = arith.constant 0 : i32
    %c0_i32_0 = arith.constant 0 : i32
    %c0_i32_1 = arith.constant 0 : i32
    return %c0_i32, %c0_i32_0 : i32, i32
  }
  func.func @transform_5(%arg0: i32) -> (i32, i32) {
    %c0_i32 = arith.constant 0 : i32
    %c0_i32_0 = arith.constant 0 : i32
    %c0_i32_1 = arith.constant 0 : i32
    return %c0_i32, %c0_i32_0 : i32, i32
  }
  func.func @transform_6(%arg0: i32) -> (i32, i32) {
    %c0_i32 = arith.constant 0 : i32
    %c0_i32_0 = arith.constant 0 : i32
    %c0_i32_1 = arith.constant 0 : i32
    return %c0_i32, %c0_i32_0 : i32, i32
  }
  func.func @transform_7(%arg0: i32) -> (i32, i32) {
    %c0_i32 = arith.constant 0 : i32
    %c0_i32_0 = arith.constant 0 : i32
    %c0_i32_1 = arith.constant 0 : i32
    return %c0_i32, %c0_i32_0 : i32, i32
  }
  func.func @transform_8(%arg0: i32) -> (i32, i32) {
    %c0_i32 = arith.constant 0 : i32
    %c0_i32_0 = arith.constant 0 : i32
    %c0_i32_1 = arith.constant 0 : i32
    return %c0_i32, %c0_i32_0 : i32, i32
  }
  func.func @transform_9(%arg0: i32) -> (i32, i32, i32) {
    %c0_i32 = arith.constant 0 : i32
    %c0_i32_0 = arith.constant 0 : i32
    %c0_i32_1 = arith.constant 0 : i32
    return %arg0, %c0_i32, %c0_i32_0 : i32, i32, i32
  }
  func.func @transform_10(%arg0: i32) -> (i32, i32, i32) {
    %c0_i32 = arith.constant 0 : i32
    %c0_i32_0 = arith.constant 0 : i32
    %c0_i32_1 = arith.constant 0 : i32
    return %arg0, %c0_i32, %c0_i32_0 : i32, i32, i32
  }
}

</mosaic_0001>

<llo_original>
// kernel: tpu_custom_call.1
$region0: #{tpu_custom_call.1}
  #allocation0 [shape = 'u32[]', space=smem, size = 0x4, offset = 0x4, fixed_abs, tag = 'smem constant byte address 0x4 - core index']
  #allocation1 [shape = 'u32[144,128]{1,0:T(1,128)}', space=vmem, size = 0x12000, scoped, tag = 'internal scratch']
  #allocation2 [shape = 'f32[2,23,6]{2,1,0:T(8,128)}', space=vmem, size = 0x6000, scoped, tag = 'scratch operand']
  %s0 = inlined_call_operand.vmem [shape: f32[4,16,6], index: 0, kind: input, shape index: {}]
  %s1 = inlined_call_operand.vmem [shape: f32[48,32], index: 1, kind: input, shape index: {}]
  %s2 = inlined_call_operand.vmem [shape: f32[1,32], index: 2, kind: input, shape index: {}]
  %s3 = inlined_call_operand.vmem [shape: f32[32,32], index: 3, kind: input, shape index: {}]
  %s4 = inlined_call_operand.vmem [shape: f32[1,32], index: 4, kind: input, shape index: {}]
  %s5 = inlined_call_operand.vmem [shape: f32[32,4], index: 5, kind: input, shape index: {}]
  %s6 = inlined_call_operand.vmem [shape: f32[1,4], index: 6, kind: input, shape index: {}]
  %s7 = inlined_call_operand.vmem [shape: f32[32,4], index: 7, kind: input, shape index: {}]
  %s8 = inlined_call_operand.vmem [shape: f32[1,4], index: 8, kind: input, shape index: {}]
  %s9 = inlined_call_operand.vmem [shape: f32[4,16,4], index: 9, kind: output, shape index: {0}]
  %s10 = inlined_call_operand.vmem [shape: f32[4,16,4], index: 10, kind: output, shape index: {1}]
  %11 = xla_tuple %s9, %s10
  %s12 = sld [smem:[#allocation0]]
  $region77: #{tpu_custom_call.1} parent=0
    _
  %s14 = ssub.s32 1, %s12
  %s15 = scalar_select 0, %s14, %s12
  loop: start=0, step=1, limit=4
  $region2: #{tpu_custom_call.1} parent=0 // loop_pre_header
    _
  $region3: #{tpu_custom_call.1} parent=0 // loop_header
    %s17 = sphi 0, %s21
    %p18 = scmp.ge.s32.totalorder %s17, 4
    %s27 = sphi 0, %s29
    %s30 = sphi 0, %s27
    %s31 = sphi 0, %s30
    %s47 = sphi 0, %s31
    %s51 = sphi 0, %s51
    %s53 = sphi 0, %s51
    %s54 = sphi 0, %s53
    %s68 = sphi 0, %s54
    %s72 = sphi 0, %s72
    %s74 = sphi 0, %s72
    %s75 = sphi 0, %s74
    %s89 = sphi 0, %s75
    %s93 = sphi 0, %s93
    %s95 = sphi 0, %s93
    %s96 = sphi 0, %s95
    %s110 = sphi 0, %s96
    %s114 = sphi 0, %s114
    %s116 = sphi 0, %s114
    %s117 = sphi 0, %s116
    %s131 = sphi 0, %s117
    %s135 = sphi 0, %s135
    %s137 = sphi 0, %s135
    %s138 = sphi 0, %s137
    %s152 = sphi 0, %s138
    %s156 = sphi 0, %s156
    %s158 = sphi 0, %s156
    %s159 = sphi 0, %s158
    %s173 = sphi 0, %s159
    %s177 = sphi 0, %s177
    %s179 = sphi 0, %s177
    %s180 = sphi 0, %s179
    %s194 = sphi 0, %s180
    %s198 = sphi 0, %s198
    %s200 = sphi 0, %s198
    %s201 = sphi 0, %s200
    %s215 = sphi 0, %s201
    %s221 = sphi 0, %s223
    %s224 = sphi 0, %s221
    %s225 = sphi 0, %s224
    %s241 = sphi 0, %s225
    %s247 = sphi 0, %s249
    %s250 = sphi 0, %s247
    %s251 = sphi 0, %s250
    %s267 = sphi 0, %s251
  $region4: #{tpu_custom_call.1} parent=0 // loop_header_branch
    %20 = sbr.rel (%p18) target = $region8
  $region5: #{tpu_custom_call.1} parent=0 // loop_body
    %s22 = ssub.s32 %s17, 1
    %s23 = ssub.s32 %s17, 2
    %s24 = sadd.s32 %s17, 1
    %s25 = ssub.s32 %s17, %s24
    %p26 = scmp.eq.s32.totalorder %s25, 0
    %s28 = sadd.s32 %s27, 1
    %s29 = scalar_select %p26, %s27, %s28
    %p32 = pneg %p26
    %p33 = scmp.eq.s32.totalorder %s17, 1
    %p34 = por %p32, %p33
    %p35 = scmp.ne.s32.totalorder %s27, %s30
    %p36 = scmp.eq.s32.totalorder %s17, 0
    %p37 = por %p35, %p36
    %p38 = scmp.ne.s32.totalorder %s27, %s30
    %p39 = scmp.eq.s32.totalorder %s22, 1
    %p40 = por %p38, %p39
    %p41 = scmp.ne.s32.totalorder %s30, %s31
    %p42 = scmp.eq.s32.totalorder %s22, 0
    %p43 = por %p41, %p42
    %p44 = scmp.ne.s32.totalorder %s30, %s31
    %p45 = scmp.eq.s32.totalorder %s23, 1
    %p46 = por %p44, %p45
    %p48 = scmp.ne.s32.totalorder %s31, %s47
    %p49 = scmp.eq.s32.totalorder %s23, 0
    %p50 = por %p48, %p49
    %s52 = sadd.s32 %s51, 1
    %p55 = scmp.eq.s32.totalorder %s17, 1
    %p56 = scmp.ne.s32.totalorder %s51, %s53
    %p57 = scmp.eq.s32.totalorder %s17, 0
    %p58 = por %p56, %p57
    %p59 = scmp.ne.s32.totalorder %s51, %s53
    %p60 = scmp.eq.s32.totalorder %s22, 1
    %p61 = por %p59, %p60
    %p62 = scmp.ne.s32.totalorder %s53, %s54
    %p63 = scmp.eq.s32.totalorder %s22, 0
    %p64 = por %p62, %p63
    %p65 = scmp.ne.s32.totalorder %s53, %s54
    %p66 = scmp.eq.s32.totalorder %s23, 1
    %p67 = por %p65, %p66
    %p69 = scmp.ne.s32.totalorder %s54, %s68
    %p70 = scmp.eq.s32.totalorder %s23, 0
    %p71 = por %p69, %p70
    %s73 = sadd.s32 %s72, 1
    %p76 = scmp.eq.s32.totalorder %s17, 1
    %p77 = scmp.ne.s32.totalorder %s72, %s74
    %p78 = scmp.eq.s32.totalorder %s17, 0
    %p79 = por %p77, %p78
    %p80 = scmp.ne.s32.totalorder %s72, %s74
    %p81 = scmp.eq.s32.totalorder %s22, 1
    %p82 = por %p80, %p81
    %p83 = scmp.ne.s32.totalorder %s74, %s75
    %p84 = scmp.eq.s32.totalorder %s22, 0
    %p85 = por %p83, %p84
    %p86 = scmp.ne.s32.totalorder %s74, %s75
    %p87 = scmp.eq.s32.totalorder %s23, 1
    %p88 = por %p86, %p87
    %p90 = scmp.ne.s32.totalorder %s75, %s89
    %p91 = scmp.eq.s32.totalorder %s23, 0
    %p92 = por %p90, %p91
    %s94 = sadd.s32 %s93, 1
    %p97 = scmp.eq.s32.totalorder %s17, 1
    %p98 = scmp.ne.s32.totalorder %s93, %s95
    %p99 = scmp.eq.s32.totalorder %s17, 0
    %p100 = por %p98, %p99
    %p101 = scmp.ne.s32.totalorder %s93, %s95
    %p102 = scmp.eq.s32.totalorder %s22, 1
    %p103 = por %p101, %p102
    %p104 = scmp.ne.s32.totalorder %s95, %s96
    %p105 = scmp.eq.s32.totalorder %s22, 0
    %p106 = por %p104, %p105
    %p107 = scmp.ne.s32.totalorder %s95, %s96
    %p108 = scmp.eq.s32.totalorder %s23, 1
    %p109 = por %p107, %p108
    %p111 = scmp.ne.s32.totalorder %s96, %s110
    %p112 = scmp.eq.s32.totalorder %s23, 0
    %p113 = por %p111, %p112
    %s115 = sadd.s32 %s114, 1
    %p118 = scmp.eq.s32.totalorder %s17, 1
    %p119 = scmp.ne.s32.totalorder %s114, %s116
    %p120 = scmp.eq.s32.totalorder %s17, 0
    %p121 = por %p119, %p120
    %p122 = scmp.ne.s32.totalorder %s114, %s116
    %p123 = scmp.eq.s32.totalorder %s22, 1
    %p124 = por %p122, %p123
    %p125 = scmp.ne.s32.totalorder %s116, %s117
    %p126 = scmp.eq.s32.totalorder %s22, 0
    %p127 = por %p125, %p126
    %p128 = scmp.ne.s32.totalorder %s116, %s117
    %p129 = scmp.eq.s32.totalorder %s23, 1
    %p130 = por %p128, %p129
    %p132 = scmp.ne.s32.totalorder %s117, %s131
    %p133 = scmp.eq.s32.totalorder %s23, 0
    %p134 = por %p132, %p133
    %s136 = sadd.s32 %s135, 1
    %p139 = scmp.eq.s32.totalorder %s17, 1
    %p140 = scmp.ne.s32.totalorder %s135, %s137
    %p141 = scmp.eq.s32.totalorder %s17, 0
    %p142 = por %p140, %p141
    %p143 = scmp.ne.s32.totalorder %s135, %s137
    %p144 = scmp.eq.s32.totalorder %s22, 1
    %p145 = por %p143, %p144
    %p146 = scmp.ne.s32.totalorder %s137, %s138
    %p147 = scmp.eq.s32.totalorder %s22, 0
    %p148 = por %p146, %p147
    %p149 = scmp.ne.s32.totalorder %s137, %s138
    %p150 = scmp.eq.s32.totalorder %s23, 1
    %p151 = por %p149, %p150
    %p153 = scmp.ne.s32.totalorder %s138, %s152
    %p154 = scmp.eq.s32.totalorder %s23, 0
    %p155 = por %p153, %p154
    %s157 = sadd.s32 %s156, 1
    %p160 = scmp.eq.s32.totalorder %s17, 1
    %p161 = scmp.ne.s32.totalorder %s156, %s158
    %p162 = scmp.eq.s32.totalorder %s17, 0
    %p163 = por %p161, %p162
    %p164 = scmp.ne.s32.totalorder %s156, %s158
    %p165 = scmp.eq.s32.totalorder %s22, 1
    %p166 = por %p164, %p165
    %p167 = scmp.ne.s32.totalorder %s158, %s159
    %p168 = scmp.eq.s32.totalorder %s22, 0
    %p169 = por %p167, %p168
    %p170 = scmp.ne.s32.totalorder %s158, %s159
    %p171 = scmp.eq.s32.totalorder %s23, 1
    %p172 = por %p170, %p171
    %p174 = scmp.ne.s32.totalorder %s159, %s173
    %p175 = scmp.eq.s32.totalorder %s23, 0
    %p176 = por %p174, %p175
    %s178 = sadd.s32 %s177, 1
    %p181 = scmp.eq.s32.totalorder %s17, 1
    %p182 = scmp.ne.s32.totalorder %s177, %s179
    %p183 = scmp.eq.s32.totalorder %s17, 0
    %p184 = por %p182, %p183
    %p185 = scmp.ne.s32.totalorder %s177, %s179
    %p186 = scmp.eq.s32.totalorder %s22, 1
    %p187 = por %p185, %p186
    %p188 = scmp.ne.s32.totalorder %s179, %s180
    %p189 = scmp.eq.s32.totalorder %s22, 0
    %p190 = por %p188, %p189
    %p191 = scmp.ne.s32.totalorder %s179, %s180
    %p192 = scmp.eq.s32.totalorder %s23, 1
    %p193 = por %p191, %p192
    %p195 = scmp.ne.s32.totalorder %s180, %s194
    %p196 = scmp.eq.s32.totalorder %s23, 0
    %p197 = por %p195, %p196
    %s199 = sadd.s32 %s198, 1
    %p202 = scmp.eq.s32.totalorder %s17, 1
    %p203 = scmp.ne.s32.totalorder %s198, %s200
    %p204 = scmp.eq.s32.totalorder %s17, 0
    %p205 = por %p203, %p204
    %p206 = scmp.ne.s32.totalorder %s198, %s200
    %p207 = scmp.eq.s32.totalorder %s22, 1
    %p208 = por %p206, %p207
    %p209 = scmp.ne.s32.totalorder %s200, %s201
    %p210 = scmp.eq.s32.totalorder %s22, 0
    %p211 = por %p209, %p210
    %p212 = scmp.ne.s32.totalorder %s200, %s201
    %p213 = scmp.eq.s32.totalorder %s23, 1
    %p214 = por %p212, %p213
    %p216 = scmp.ne.s32.totalorder %s201, %s215
    %p217 = scmp.eq.s32.totalorder %s23, 0
    %p218 = por %p216, %p217
    %s219 = ssub.s32 %s17, %s24
    %p220 = scmp.eq.s32.totalorder %s219, 0
    %s222 = sadd.s32 %s221, 1
    %s223 = scalar_select %p220, %s221, %s222
    %p226 = pneg %p220
    %p227 = scmp.eq.s32.totalorder %s17, 1
    %p228 = por %p226, %p227
    %p229 = scmp.ne.s32.totalorder %s221, %s224
    %p230 = scmp.eq.s32.totalorder %s17, 0
    %p231 = por %p229, %p230
    %p232 = scmp.ne.s32.totalorder %s221, %s224
    %p233 = scmp.eq.s32.totalorder %s22, 1
    %p234 = por %p232, %p233
    %p235 = scmp.ne.s32.totalorder %s224, %s225
    %p236 = scmp.eq.s32.totalorder %s22, 0
    %p237 = por %p235, %p236
    %p238 = scmp.ne.s32.totalorder %s224, %s225
    %p239 = scmp.eq.s32.totalorder %s23, 1
    %p240 = por %p238, %p239
    %p242 = scmp.ne.s32.totalorder %s225, %s241
    %p243 = scmp.eq.s32.totalorder %s23, 0
    %p244 = por %p242, %p243
    %s245 = ssub.s32 %s17, %s24
    %p246 = scmp.eq.s32.totalorder %s245, 0
    %s248 = sadd.s32 %s247, 1
    %s249 = scalar_select %p246, %s247, %s248
    %p252 = pneg %p246
    %p253 = scmp.eq.s32.totalorder %s17, 1
    %p254 = por %p252, %p253
    %p255 = scmp.ne.s32.totalorder %s247, %s250
    %p256 = scmp.eq.s32.totalorder %s17, 0
    %p257 = por %p255, %p256
    %p258 = scmp.ne.s32.totalorder %s247, %s250
    %p259 = scmp.eq.s32.totalorder %s22, 1
    %p260 = por %p258, %p259
    %p261 = scmp.ne.s32.totalorder %s250, %s251
    %p262 = scmp.eq.s32.totalorder %s22, 0
    %p263 = por %p261, %p262
    %p264 = scmp.ne.s32.totalorder %s250, %s251
    %p265 = scmp.eq.s32.totalorder %s23, 1
    %p266 = por %p264, %p265
    %p268 = scmp.ne.s32.totalorder %s251, %s267
    %p269 = scmp.eq.s32.totalorder %s23, 0
    %p270 = por %p268, %p269
    %p271 = scmp.le.s32.totalorder 1, %s17
    %p272 = scmp.lt.s32.totalorder %s17, 3
    %p273 = pnand %p271, %p272
    %p274 = pneg %p273
    // Predicated region
    $region9: #{tpu_custom_call.1} parent=5 // pred_check
      _
    $region10: #{tpu_custom_call.1} parent=5 // pred_check_branch
      %276 = sbr.rel (%p273) target = $region12
    $region11: #{tpu_custom_call.1} parent=5 // pred_region
      %s277 = ssub.s32 %s17, 1
      // Predicated region
      $region13: #{tpu_custom_call.1} parent=11 // pred_check
        %p278 = pneg %p64
      $region14: #{tpu_custom_call.1} parent=11 // pred_check_branch
        %280 = sbr.rel (%p278) target = $region16
      $region15: #{tpu_custom_call.1} parent=11 // pred_region
        _
      $region16: #{tpu_custom_call.1} parent=11 // pred_fallthru
        _
      // Predicated region
      $region17: #{tpu_custom_call.1} parent=11 // pred_check
        %p281 = pneg %p85
      $region18: #{tpu_custom_call.1} parent=11 // pred_check_branch
        %283 = sbr.rel (%p281) target = $region20
      $region19: #{tpu_custom_call.1} parent=11 // pred_region
        _
      $region20: #{tpu_custom_call.1} parent=11 // pred_fallthru
        _
      // Predicated region
      $region21: #{tpu_custom_call.1} parent=11 // pred_check
        %p284 = pneg %p106
      $region22: #{tpu_custom_call.1} parent=11 // pred_check_branch
        %286 = sbr.rel (%p284) target = $region24
      $region23: #{tpu_custom_call.1} parent=11 // pred_region
        _
      $region24: #{tpu_custom_call.1} parent=11 // pred_fallthru
        _
      // Predicated region
      $region25: #{tpu_custom_call.1} parent=11 // pred_check
        %p287 = pneg %p127
      $region26: #{tpu_custom_call.1} parent=11 // pred_check_branch
        %289 = sbr.rel (%p287) target = $region28
      $region27: #{tpu_custom_call.1} parent=11 // pred_region
        _
      $region28: #{tpu_custom_call.1} parent=11 // pred_fallthru
        _
      // Predicated region
      $region29: #{tpu_custom_call.1} parent=11 // pred_check
        %p290 = pneg %p148
      $region30: #{tpu_custom_call.1} parent=11 // pred_check_branch
        %292 = sbr.rel (%p290) target = $region32
      $region31: #{tpu_custom_call.1} parent=11 // pred_region
        _
      $region32: #{tpu_custom_call.1} parent=11 // pred_fallthru
        _
      // Predicated region
      $region33: #{tpu_custom_call.1} parent=11 // pred_check
        %p293 = pneg %p169
      $region34: #{tpu_custom_call.1} parent=11 // pred_check_branch
        %295 = sbr.rel (%p293) target = $region36
      $region35: #{tpu_custom_call.1} parent=11 // pred_region
        _
      $region36: #{tpu_custom_call.1} parent=11 // pred_fallthru
        _
      // Predicated region
      $region37: #{tpu_custom_call.1} parent=11 // pred_check
        %p296 = pneg %p190
      $region38: #{tpu_custom_call.1} parent=11 // pred_check_branch
        %298 = sbr.rel (%p296) target = $region40
      $region39: #{tpu_custom_call.1} parent=11 // pred_region
        _
      $region40: #{tpu_custom_call.1} parent=11 // pred_fallthru
        _
      // Predicated region
      $region41: #{tpu_custom_call.1} parent=11 // pred_check
        %p299 = pneg %p211
      $region42: #{tpu_custom_call.1} parent=11 // pred_check_branch
        %301 = sbr.rel (%p299) target = $region44
      $region43: #{tpu_custom_call.1} parent=11 // pred_region
        _
      $region44: #{tpu_custom_call.1} parent=11 // pred_fallthru
        _
    $region12: #{tpu_custom_call.1} parent=5 // pred_fallthru
      _
    %p302 = scmp.lt.s32.totalorder %s17, 2
    // Predicated region
    $region45: #{tpu_custom_call.1} parent=5 // pred_check
      %p303 = pneg %p302
    $region46: #{tpu_custom_call.1} parent=5 // pred_check_branch
      %305 = sbr.rel (%p303) target = $region48
    $region47: #{tpu_custom_call.1} parent=5 // pred_region
      // Predicated region
      $region49: #{tpu_custom_call.1} parent=47 // pred_check
        %p306 = pneg %p37
      $region50: #{tpu_custom_call.1} parent=47 // pred_check_branch
        %308 = sbr.rel (%p306) target = $region52
      $region51: #{tpu_custom_call.1} parent=47 // pred_region
        %s309 = smul.u32 2, %s17
        %p310 = scmp.lt.s32.totalorder %s309, 3
        %s311 = scalar_select %p310, %s309, 3
        %s312 = smul.addr %s311, 2
        %s313 = smul.addr %s312, 8
        %s314 = scalar_lea.vmem %s0, %s313
        %s315 = smul.u32 2, %s17
      $region52: #{tpu_custom_call.1} parent=47 // pred_fallthru
        _
    $region48: #{tpu_custom_call.1} parent=5 // pred_fallthru
      _
    %p316 = scmp.le.s32.totalorder 1, %s17
    %p317 = scmp.lt.s32.totalorder %s17, 3
    %p318 = pnand %p316, %p317
    %p319 = pneg %p318
    // Predicated region
    $region53: #{tpu_custom_call.1} parent=5 // pred_check
      _
    $region54: #{tpu_custom_call.1} parent=5 // pred_check_branch
      %321 = sbr.rel (%p318) target = $region56
    $region55: #{tpu_custom_call.1} parent=5 // pred_region
      %s322 = ssub.s32 %s17, 1
      %s323 = smul.u32 2, %s22
      %p324 = scmp.lt.s32.totalorder %s323, 3
      %s325 = scalar_select %p324, %s323, 3
      %s326 = smul.addr %s325, 2
      %s327 = smul.addr %s326, 8
      %s328 = scalar_lea.vmem %s0, %s327
      %p329 = pneg %p43
      %p330 = pneg %p40
      %p331 = pneg %p64
      %p332 = pneg %p61
      %p333 = pneg %p85
      %p334 = pneg %p82
      %p335 = pneg %p106
      %p336 = pneg %p103
      %p337 = pneg %p127
      %p338 = pneg %p124
      %p339 = pneg %p148
      %p340 = pneg %p145
      %p341 = pneg %p169
      %p342 = pneg %p166
      %p343 = pneg %p190
      %p344 = pneg %p187
      %p345 = pneg %p211
      %p346 = pneg %p208
      %p347 = pneg %p237
      %p348 = pneg %p234
      %s349 = smul.u32 2, %s22
      %p350 = scmp.lt.s32.totalorder %s349, 3
      %s351 = scalar_select %p350, %s349, 3
      %s352 = smul.addr %s351, 2
      %s353 = smul.addr %s352, 8
      %s354 = scalar_lea.vmem %s9, %s353
      %p355 = pneg %p263
      %p356 = pneg %p260
      %s357 = smul.u32 2, %s22
      %p358 = scmp.lt.s32.totalorder %s357, 3
      %s359 = scalar_select %p358, %s357, 3
      %s360 = smul.addr %s359, 2
      %s361 = smul.addr %s360, 8
      %s362 = scalar_lea.vmem %s10, %s361
      %s363 = smul.u32 2, %s22
      %p364 = scmp.lt.s32.totalorder %s363, 3
      %s365 = scalar_select %p364, %s363, 3
      %s366 = smul.addr %s365, 2
      %s367 = smul.addr %s366, 8
      %s368 = scalar_lea.vmem %s0, %s367
      %s369 = smul.u32 2, %s22
      %s370 = smul.u32 2, %s22
      %p371 = scmp.lt.s32.totalorder %s370, 3
      %s372 = scalar_select %p371, %s370, 3
      %s373 = smul.addr %s372, 2
      %s374 = smul.addr %s373, 8
      %s375 = scalar_lea.vmem %s9, %s374
      %s376 = smul.u32 2, %s22
      %s377 = smul.u32 2, %s22
      %p378 = scmp.lt.s32.totalorder %s377, 3
      %s379 = scalar_select %p378, %s377, 3
      %s380 = smul.addr %s379, 2
      %s381 = smul.addr %s380, 8
      %s382 = scalar_lea.vmem %s10, %s381
      %s383 = smul.u32 2, %s22
      %vm384 = vcmask 48128
      %385 = vst.msk [vmem:[#allocation2] sm:$0xff] %vm384, 0.0
      %386 = vst.msk [vmem:[#allocation2 + $0x8] sm:$0xff] %vm384, 0.0
      %vm387 = vcmask 47104
      %388 = vst.msk [vmem:[#allocation2 + $0x10] sm:$0x7f] %vm387, 0.0
      %389 = vst.msk [vmem:[#allocation2 + $0x18] sm:$0xff] %vm384, 0.0
      %390 = vst.msk [vmem:[#allocation2 + $0x20] sm:$0xff] %vm384, 0.0
      %391 = vst.msk [vmem:[#allocation2 + $0x28] sm:$0x7f] %vm387, 0.0
      %v392 = vld [vmem:[%s368] sm:$0xff]
      %v393 = vld [vmem:[%s368 + $0x8] sm:$0xff]
      %v394 = vld [vmem:[%s368 + $0x10] sm:$0xff]
      %v395 = vld [vmem:[%s368 + $0x18] sm:$0xff]
      %396 = vst.msk [vmem:[#allocation2 + $0x3] sm:$0xff] %vm384, %v392
      %397 = vst.msk [vmem:[#allocation2 + $0xb] sm:$0xff] %vm384, %v393
      %398 = vst.msk [vmem:[#allocation2 + $0x1b] sm:$0xff] %vm384, %v394
      %399 = vst.msk [vmem:[#allocation2 + $0x23] sm:$0xff] %vm384, %v395
      %v400 = vld [vmem:[#allocation2] sm:$0xff]
      %v401 = vld [vmem:[#allocation2 + $0x8] sm:$0xff]
      %v402 = vld [vmem:[#allocation2 + $0x10] sm:$0x7f]
      %v403 = vld [vmem:[#allocation2 + $0x18] sm:$0xff]
      %v404 = vld [vmem:[#allocation2 + $0x20] sm:$0xff]
      %v405 = vld [vmem:[#allocation2 + $0x28] sm:$0x7f]
      %vm412 = vcmask 1046528
      %v413 = vrot.slane %v400, 1
      %v414 = vrot.slane %v401, 1
      %v415 = vsel %vm412, %v413, %v414
      %v416 = vrot.slane %v402, 1
      %v417 = vsel %vm412, %v414, %v416
      %v418 = vrot.slane %v403, 1
      %v419 = vrot.slane %v404, 1
      %v420 = vsel %vm412, %v418, %v419
      %v421 = vrot.slane %v405, 1
      %v422 = vsel %vm412, %v419, %v421
      %423 = vrot.lane.b32.xlu0 %v415, 6
      %v424 = vpop.permute.xlu0 %423
      %425 = vrot.lane.b32.xlu0 %v417, 6
      %v426 = vpop.permute.xlu0 %425
      %427 = vrot.lane.b32.xlu0 %v420, 6
      %v428 = vpop.permute.xlu0 %427
      %429 = vrot.lane.b32.xlu0 %v422, 6
      %v430 = vpop.permute.xlu0 %429
      %vm435 = vcmask 1045504
      %v436 = vrot.slane %v400, 2
      %v437 = vrot.slane %v401, 2
      %v438 = vsel %vm435, %v436, %v437
      %v439 = vrot.slane %v402, 2
      %v440 = vsel %vm435, %v437, %v439
      %v441 = vrot.slane %v403, 2
      %v442 = vrot.slane %v404, 2
      %v443 = vsel %vm435, %v441, %v442
      %v444 = vrot.slane %v405, 2
      %v445 = vsel %vm435, %v442, %v444
      %446 = vrot.lane.b32.xlu0 %v438, 12
      %v447 = vpop.permute.xlu0 %446
      %448 = vrot.lane.b32.xlu0 %v440, 12
      %v449 = vpop.permute.xlu0 %448
      %450 = vrot.lane.b32.xlu0 %v443, 12
      %v451 = vpop.permute.xlu0 %450
      %452 = vrot.lane.b32.xlu0 %v445, 12
      %v453 = vpop.permute.xlu0 %452
      %vm458 = vcmask 1044480
      %v459 = vrot.slane %v400, 3
      %v460 = vrot.slane %v401, 3
      %v461 = vsel %vm458, %v459, %v460
      %v462 = vrot.slane %v402, 3
      %v463 = vsel %vm458, %v460, %v462
      %v464 = vrot.slane %v403, 3
      %v465 = vrot.slane %v404, 3
      %v466 = vsel %vm458, %v464, %v465
      %v467 = vrot.slane %v405, 3
      %v468 = vsel %vm458, %v465, %v467
      %469 = vrot.lane.b32.xlu0 %v461, 18
      %v470 = vpop.permute.xlu0 %469
      %471 = vrot.lane.b32.xlu0 %v463, 18
      %v472 = vpop.permute.xlu0 %471
      %473 = vrot.lane.b32.xlu0 %v466, 18
      %v474 = vpop.permute.xlu0 %473
      %475 = vrot.lane.b32.xlu0 %v468, 18
      %v476 = vpop.permute.xlu0 %475
      %vm481 = vcmask 1043456
      %v482 = vrot.slane %v400, 4
      %v483 = vrot.slane %v401, 4
      %v484 = vsel %vm481, %v482, %v483
      %v485 = vrot.slane %v402, 4
      %v486 = vsel %vm481, %v483, %v485
      %v487 = vrot.slane %v403, 4
      %v488 = vrot.slane %v404, 4
      %v489 = vsel %vm481, %v487, %v488
      %v490 = vrot.slane %v405, 4
      %v491 = vsel %vm481, %v488, %v490
      %492 = vrot.lane.b32.xlu0 %v484, 24
      %v493 = vpop.permute.xlu0 %492
      %494 = vrot.lane.b32.xlu0 %v486, 24
      %v495 = vpop.permute.xlu0 %494
      %496 = vrot.lane.b32.xlu0 %v489, 24
      %v497 = vpop.permute.xlu0 %496
      %498 = vrot.lane.b32.xlu0 %v491, 24
      %v499 = vpop.permute.xlu0 %498
      %vm504 = vcmask 1042432
      %v505 = vrot.slane %v400, 5
      %v506 = vrot.slane %v401, 5
      %v507 = vsel %vm504, %v505, %v506
      %v508 = vrot.slane %v402, 5
      %v509 = vsel %vm504, %v506, %v508
      %v510 = vrot.slane %v403, 5
      %v511 = vrot.slane %v404, 5
      %v512 = vsel %vm504, %v510, %v511
      %v513 = vrot.slane %v405, 5
      %v514 = vsel %vm504, %v511, %v513
      %515 = vrot.lane.b32.xlu0 %v507, 30
      %v516 = vpop.permute.xlu0 %515
      %517 = vrot.lane.b32.xlu0 %v509, 30
      %v518 = vpop.permute.xlu0 %517
      %519 = vrot.lane.b32.xlu0 %v512, 30
      %v520 = vpop.permute.xlu0 %519
      %521 = vrot.lane.b32.xlu0 %v514, 30
      %v522 = vpop.permute.xlu0 %521
      %vm527 = vcmask 1041408
      %v528 = vrot.slane %v400, 6
      %v529 = vrot.slane %v401, 6
      %v530 = vsel %vm527, %v528, %v529
      %v531 = vrot.slane %v402, 6
      %v532 = vsel %vm527, %v529, %v531
      %v533 = vrot.slane %v403, 6
      %v534 = vrot.slane %v404, 6
      %v535 = vsel %vm527, %v533, %v534
      %v536 = vrot.slane %v405, 6
      %v537 = vsel %vm527, %v534, %v536
      %538 = vrot.lane.b32.xlu0 %v530, 36
      %v539 = vpop.permute.xlu0 %538
      %540 = vrot.lane.b32.xlu0 %v532, 36
      %v541 = vpop.permute.xlu0 %540
      %542 = vrot.lane.b32.xlu0 %v535, 36
      %v543 = vpop.permute.xlu0 %542
      %544 = vrot.lane.b32.xlu0 %v537, 36
      %v545 = vpop.permute.xlu0 %544
      %vm550 = vcmask 1040384
      %v551 = vrot.slane %v400, 7
      %v552 = vrot.slane %v401, 7
      %v553 = vsel %vm550, %v551, %v552
      %v554 = vrot.slane %v402, 7
      %v555 = vsel %vm550, %v552, %v554
      %v556 = vrot.slane %v403, 7
      %v557 = vrot.slane %v404, 7
      %v558 = vsel %vm550, %v556, %v557
      %v559 = vrot.slane %v405, 7
      %v560 = vsel %vm550, %v557, %v559
      %561 = vrot.lane.b32.xlu0 %v553, 42
      %v562 = vpop.permute.xlu0 %561
      %563 = vrot.lane.b32.xlu0 %v555, 42
      %v564 = vpop.permute.xlu0 %563
      %565 = vrot.lane.b32.xlu0 %v558, 42
      %v566 = vpop.permute.xlu0 %565
      %567 = vrot.lane.b32.xlu0 %v560, 42
      %v568 = vpop.permute.xlu0 %567
      %v573 = vsel %vm384, %v400, %v424
      %v574 = vsel %vm384, %v401, %v426
      %v575 = vsel %vm384, %v403, %v428
      %v576 = vsel %vm384, %v404, %v430
      %vm577 = vcmask 97280
      %v578 = vsel %vm577, %v573, %v447
      %v579 = vsel %vm577, %v574, %v449
      %v580 = vsel %vm577, %v575, %v451
      %v581 = vsel %vm577, %v576, %v453
      %vm582 = vcmask 146432
      %v583 = vsel %vm582, %v578, %v470
      %v584 = vsel %vm582, %v579, %v472
      %v585 = vsel %vm582, %v580, %v474
      %v586 = vsel %vm582, %v581, %v476
      %vm587 = vcmask 195584
      %v588 = vsel %vm587, %v583, %v493
      %v589 = vsel %vm587, %v584, %v495
      %v590 = vsel %vm587, %v585, %v497
      %v591 = vsel %vm587, %v586, %v499
      %vm592 = vcmask 244736
      %v593 = vsel %vm592, %v588, %v516
      %v594 = vsel %vm592, %v589, %v518
      %v595 = vsel %vm592, %v590, %v520
      %v596 = vsel %vm592, %v591, %v522
      %vm597 = vcmask 293888
      %v598 = vsel %vm597, %v593, %v539
      %v599 = vsel %vm597, %v594, %v541
      %v600 = vsel %vm597, %v595, %v543
      %v601 = vsel %vm597, %v596, %v545
      %vm602 = vcmask 343040
      %v603 = vsel %vm602, %v598, %v562
      %v604 = vsel %vm602, %v599, %v564
      %v605 = vsel %vm602, %v600, %v566
      %v606 = vsel %vm602, %v601, %v568
      %v607 = vld [vmem:[%s1] sm:$0xff]
      %v608 = vld [vmem:[%s1 + $0x8] sm:$0xff]
      %v609 = vld [vmem:[%s1 + $0x10] sm:$0xff]
      %v610 = vld [vmem:[%s1 + $0x18] sm:$0xff]
      %v611 = vld [vmem:[%s1 + $0x20] sm:$0xff]
      %v612 = vld [vmem:[%s1 + $0x28] sm:$0xff]
      %v613 = vld [vmem:[%s2] sm:$0x1]
      %v615 = vlaneseq
      %v616 = vshrl.u32 %v615, 7
      %v617 = vsub.s32 0, %v616
      %v618 = vrot.slane %v613, %v617
      %vm620 = vcmask 392192
      %v622 = vsel %vm620, %v603, 0
      %v625 = vsel %vm620, %v604, 0
      %v628 = vsel %vm620, %v605, 0
      %v631 = vsel %vm620, %v606, 0
      %633 = vmatprep.subr.mxu0 0.0
      %634 = vmatpush1.msra.mxu0 %v607
      %635 = vmatprep.subr.mxu0 0.0
      %636 = vmatpush1.msra.mxu0 %v608
      %637 = vmatprep.subr.mxu0 0.0
      %638 = vmatpush1.msra.mxu0 %v609
      %639 = vmatprep.subr.mxu0 0.0
      %640 = vmatpush1.msra.mxu0 %v610
      %641 = vmatprep.subr.mxu0 0.0
      %642 = vmatpush1.msra.mxu0 %v611
      %643 = vmatprep.subr.mxu0 0.0
      %644 = vmatpush1.msra.mxu0 %v612
      %645 = vmatprep.subr.mxu0 0.0
      %646 = vmatpush1.msra.mxu0 0.0
      %647 = vmatprep.subr.mxu0 0.0
      %648 = vmatpush1.msra.mxu0 0.0
      %649 = vmatprep.subr.mxu0 0.0
      %650 = vmatpush1.msra.mxu0 0.0
      %651 = vmatprep.subr.mxu0 0.0
      %652 = vmatpush1.msra.mxu0 0.0
      %653 = vmatprep.subr.mxu0 0.0
      %654 = vmatpush1.msra.mxu0 0.0
      %655 = vmatprep.subr.mxu0 0.0
      %656 = vmatpush1.msra.mxu0 0.0
      %657 = vmatprep.subr.mxu0 0.0
      %658 = vmatpush1.msra.mxu0 0.0
      %659 = vmatprep.subr.mxu0 0.0
      %660 = vmatpush1.msra.mxu0 0.0
      %661 = vmatprep.subr.mxu0 0.0
      %662 = vmatpush1.msra.mxu0 0.0
      %663 = vmatprep.subr.mxu0 0.0
      %664 = vmatpush1.msra.mxu0 0.0
      %665 = vmatprep.subr.mxu0 0.0
      %666 = vmatpush1.msra.mxu0 0.0
      %667 = vmatprep.subr.mxu0 0.0
      %668 = vmatpush1.msra.mxu0 0.0
      %669 = vmatprep.subr.mxu0 0.0
      %670 = vmatpush1.msra.mxu0 0.0
      %671 = vmatprep.subr.mxu0 0.0
      %672 = vmatpush1.msra.mxu0 0.0
      %673 = vmatprep.subr.mxu0 0.0
      %674 = vmatpush1.msra.mxu0 0.0
      %675 = vmatprep.subr.mxu0 0.0
      %676 = vmatpush1.msra.mxu0 0.0
      %677 = vmatprep.subr.mxu0 0.0
      %678 = vmatpush1.msra.mxu0 0.0
      %679 = vmatprep.subr.mxu0 0.0
      %680 = vmatpush1.msra.mxu0 0.0
      %681 = vmatprep.subr.mxu0 0.0
      %682 = vmatpush1.msra.mxu0 0.0
      %683 = vmatprep.subr.mxu0 0.0
      %684 = vmatpush1.msra.mxu0 0.0
      %685 = vmatprep.subr.mxu0 0.0
      %686 = vmatpush1.msra.mxu0 0.0
      %687 = vmatprep.subr.mxu0 0.0
      %688 = vmatpush1.msra.mxu0 0.0
      %689 = vmatprep.subr.mxu0 0.0
      %690 = vmatpush1.msra.mxu0 0.0
      %691 = vmatprep.subr.mxu0 0.0
      %692 = vmatpush1.msra.mxu0 0.0
      %693 = vmatprep.subr.mxu0 0.0
      %694 = vmatpush1.msra.mxu0 0.0
      %695 = vmatprep.subr.mxu0 0.0
      %696 = vmatpush1.msra.mxu0 0.0
      %697 = vmatprep.mubr.f32.mxu0 0.0
      %698 = vmatmul.mubr.f32.gmra.mrb[0].mxu0 %v622
      %v699 = vpop.f32.mrb[0].mxu0
      %v700 = vadd.f32 %v618, %v699
      %v701 = vpop.f32.mrb[0].mxu0
      %702 = vmatprep.mubr.f32.mxu0 0.0
      %703 = vmatmul.mubr.f32.gmra.mrb[0].mxu0 %v625
      %v704 = vpop.f32.mrb[0].mxu0
      %v705 = vadd.f32 %v618, %v704
      %v706 = vpop.f32.mrb[0].mxu0
      %707 = vmatprep.mubr.f32.mxu0 0.0
      %708 = vmatmul.mubr.f32.gmra.mrb[0].mxu0 %v628
      %v709 = vpop.f32.mrb[0].mxu0
      %v710 = vadd.f32 %v618, %v709
      %v711 = vpop.f32.mrb[0].mxu0
      %712 = vmatprep.mubr.f32.mxu0 0.0
      %713 = vmatmul.mubr.f32.gmra.mrb[0].mxu0 %v631
      %v714 = vpop.f32.mrb[0].mxu0
      %v715 = vadd.f32 %v618, %v714
      %v716 = vpop.f32.mrb[0].mxu0
      %717 = vdwg.mxu0
      %v718 = vld [vmem:[%s3] sm:$0xff]
      %v719 = vld [vmem:[%s3 + $0x8] sm:$0xff]
      %v720 = vld [vmem:[%s3 + $0x10] sm:$0xff]
      %v721 = vld [vmem:[%s3 + $0x18] sm:$0xff]
      %v722 = vld [vmem:[%s4] sm:$0x1]
      %v724 = vlaneseq
      %v725 = vshrl.u32 %v724, 7
      %v726 = vsub.s32 0, %v725
      %v727 = vrot.slane %v722, %v726
      %vm729 = vcmask 261120
      %v731 = vsel %vm729, %v700, 0
      %v734 = vsel %vm729, %v705, 0
      %v737 = vsel %vm729, %v710, 0
      %v740 = vsel %vm729, %v715, 0
      %742 = vmatprep.subr.mxu0 0.0
      %743 = vmatpush1.msra.mxu0 %v718
      %744 = vmatprep.subr.mxu0 0.0
      %745 = vmatpush1.msra.mxu0 %v719
      %746 = vmatprep.subr.mxu0 0.0
      %747 = vmatpush1.msra.mxu0 %v720
      %748 = vmatprep.subr.mxu0 0.0
      %749 = vmatpush1.msra.mxu0 %v721
      %750 = vmatprep.subr.mxu0 0.0
      %751 = vmatpush1.msra.mxu0 0.0
      %752 = vmatprep.subr.mxu0 0.0
      %753 = vmatpush1.msra.mxu0 0.0
      %754 = vmatprep.subr.mxu0 0.0
      %755 = vmatpush1.msra.mxu0 0.0
      %756 = vmatprep.subr.mxu0 0.0
      %757 = vmatpush1.msra.mxu0 0.0
      %758 = vmatprep.subr.mxu0 0.0
      %759 = vmatpush1.msra.mxu0 0.0
      %760 = vmatprep.subr.mxu0 0.0
      %761 = vmatpush1.msra.mxu0 0.0
      %762 = vmatprep.subr.mxu0 0.0
      %763 = vmatpush1.msra.mxu0 0.0
      %764 = vmatprep.subr.mxu0 0.0
      %765 = vmatpush1.msra.mxu0 0.0
      %766 = vmatprep.subr.mxu0 0.0
      %767 = vmatpush1.msra.mxu0 0.0
      %768 = vmatprep.subr.mxu0 0.0
      %769 = vmatpush1.msra.mxu0 0.0
      %770 = vmatprep.subr.mxu0 0.0
      %771 = vmatpush1.msra.mxu0 0.0
      %772 = vmatprep.subr.mxu0 0.0
      %773 = vmatpush1.msra.mxu0 0.0
      %774 = vmatprep.subr.mxu0 0.0
      %775 = vmatpush1.msra.mxu0 0.0
      %776 = vmatprep.subr.mxu0 0.0
      %777 = vmatpush1.msra.mxu0 0.0
      %778 = vmatprep.subr.mxu0 0.0
      %779 = vmatpush1.msra.mxu0 0.0
      %780 = vmatprep.subr.mxu0 0.0
      %781 = vmatpush1.msra.mxu0 0.0
      %782 = vmatprep.subr.mxu0 0.0
      %783 = vmatpush1.msra.mxu0 0.0
      %784 = vmatprep.subr.mxu0 0.0
      %785 = vmatpush1.msra.mxu0 0.0
      %786 = vmatprep.subr.mxu0 0.0
      %787 = vmatpush1.msra.mxu0 0.0
      %788 = vmatprep.subr.mxu0 0.0
      %789 = vmatpush1.msra.mxu0 0.0
      %790 = vmatprep.subr.mxu0 0.0
      %791 = vmatpush1.msra.mxu0 0.0
      %792 = vmatprep.subr.mxu0 0.0
      %793 = vmatpush1.msra.mxu0 0.0
      %794 = vmatprep.subr.mxu0 0.0
      %795 = vmatpush1.msra.mxu0 0.0
      %796 = vmatprep.subr.mxu0 0.0
      %797 = vmatpush1.msra.mxu0 0.0
      %798 = vmatprep.subr.mxu0 0.0
      %799 = vmatpush1.msra.mxu0 0.0
      %800 = vmatprep.subr.mxu0 0.0
      %801 = vmatpush1.msra.mxu0 0.0
      %802 = vmatprep.subr.mxu0 0.0
      %803 = vmatpush1.msra.mxu0 0.0
      %804 = vmatprep.subr.mxu0 0.0
      %805 = vmatpush1.msra.mxu0 0.0
      %806 = vmatprep.mubr.f32.mxu0 0.0
      %807 = vmatmul.mubr.f32.gmra.mrb[0].mxu0 %v731
      %v808 = vpop.f32.mrb[0].mxu0
      %v809 = vadd.f32 %v727, %v808
      %v810 = vpop.f32.mrb[0].mxu0
      %811 = vmatprep.mubr.f32.mxu0 0.0
      %812 = vmatmul.mubr.f32.gmra.mrb[0].mxu0 %v734
      %v813 = vpop.f32.mrb[0].mxu0
      %v814 = vadd.f32 %v727, %v813
      %v815 = vpop.f32.mrb[0].mxu0
      %816 = vmatprep.mubr.f32.mxu0 0.0
      %817 = vmatmul.mubr.f32.gmra.mrb[0].mxu0 %v737
      %v818 = vpop.f32.mrb[0].mxu0
      %v819 = vadd.f32 %v727, %v818
      %v820 = vpop.f32.mrb[0].mxu0
      %821 = vmatprep.mubr.f32.mxu0 0.0
      %822 = vmatmul.mubr.f32.gmra.mrb[0].mxu0 %v740
      %v823 = vpop.f32.mrb[0].mxu0
      %v824 = vadd.f32 %v727, %v823
      %v825 = vpop.f32.mrb[0].mxu0
      %826 = vdwg.mxu0
      %v827 = vmax.f32 %v809, 0.0
      %v828 = vmax.f32 %v814, 0.0
      %v829 = vmax.f32 %v819, 0.0
      %v830 = vmax.f32 %v824, 0.0
      %v831 = vld [vmem:[%s5] sm:$0xff]
      %v832 = vld [vmem:[%s5 + $0x8] sm:$0xff]
      %v833 = vld [vmem:[%s5 + $0x10] sm:$0xff]
      %v834 = vld [vmem:[%s5 + $0x18] sm:$0xff]
      %v835 = vld [vmem:[%s6] sm:$0x1]
      %v837 = vlaneseq
      %v838 = vshrl.u32 %v837, 7
      %v839 = vsub.s32 0, %v838
      %v840 = vrot.slane %v835, %v839
      %v843 = vsel %vm729, %v827, 0
      %v846 = vsel %vm729, %v828, 0
      %v849 = vsel %vm729, %v829, 0
      %v852 = vsel %vm729, %v830, 0
      %854 = vmatprep.subr.mxu0 0.0
      %855 = vmatpush1.msra.mxu0 %v831
      %856 = vmatprep.subr.mxu0 0.0
      %857 = vmatpush1.msra.mxu0 %v832
      %858 = vmatprep.subr.mxu0 0.0
      %859 = vmatpush1.msra.mxu0 %v833
      %860 = vmatprep.subr.mxu0 0.0
      %861 = vmatpush1.msra.mxu0 %v834
      %862 = vmatprep.subr.mxu0 0.0
      %863 = vmatpush1.msra.mxu0 0.0
      %864 = vmatprep.subr.mxu0 0.0
      %865 = vmatpush1.msra.mxu0 0.0
      %866 = vmatprep.subr.mxu0 0.0
      %867 = vmatpush1.msra.mxu0 0.0
      %868 = vmatprep.subr.mxu0 0.0
      %869 = vmatpush1.msra.mxu0 0.0
      %870 = vmatprep.subr.mxu0 0.0
      %871 = vmatpush1.msra.mxu0 0.0
      %872 = vmatprep.subr.mxu0 0.0
      %873 = vmatpush1.msra.mxu0 0.0
      %874 = vmatprep.subr.mxu0 0.0
      %875 = vmatpush1.msra.mxu0 0.0
      %876 = vmatprep.subr.mxu0 0.0
      %877 = vmatpush1.msra.mxu0 0.0
      %878 = vmatprep.subr.mxu0 0.0
      %879 = vmatpush1.msra.mxu0 0.0
      %880 = vmatprep.subr.mxu0 0.0
      %881 = vmatpush1.msra.mxu0 0.0
      %882 = vmatprep.subr.mxu0 0.0
      %883 = vmatpush1.msra.mxu0 0.0
      %884 = vmatprep.subr.mxu0 0.0
      %885 = vmatpush1.msra.mxu0 0.0
      %886 = vmatprep.subr.mxu0 0.0
      %887 = vmatpush1.msra.mxu0 0.0
      %888 = vmatprep.subr.mxu0 0.0
      %889 = vmatpush1.msra.mxu0 0.0
      %890 = vmatprep.subr.mxu0 0.0
      %891 = vmatpush1.msra.mxu0 0.0
      %892 = vmatprep.subr.mxu0 0.0
      %893 = vmatpush1.msra.mxu0 0.0
      %894 = vmatprep.subr.mxu0 0.0
      %895 = vmatpush1.msra.mxu0 0.0
      %896 = vmatprep.subr.mxu0 0.0
      %897 = vmatpush1.msra.mxu0 0.0
      %898 = vmatprep.subr.mxu0 0.0
      %899 = vmatpush1.msra.mxu0 0.0
      %900 = vmatprep.subr.mxu0 0.0
      %901 = vmatpush1.msra.mxu0 0.0
      %902 = vmatprep.subr.mxu0 0.0
      %903 = vmatpush1.msra.mxu0 0.0
      %904 = vmatprep.subr.mxu0 0.0
      %905 = vmatpush1.msra.mxu0 0.0
      %906 = vmatprep.subr.mxu0 0.0
      %907 = vmatpush1.msra.mxu0 0.0
      %908 = vmatprep.subr.mxu0 0.0
      %909 = vmatpush1.msra.mxu0 0.0
      %910 = vmatprep.subr.mxu0 0.0
      %911 = vmatpush1.msra.mxu0 0.0
      %912 = vmatprep.subr.mxu0 0.0
      %913 = vmatpush1.msra.mxu0 0.0
      %914 = vmatprep.subr.mxu0 0.0
      %915 = vmatpush1.msra.mxu0 0.0
      %916 = vmatprep.subr.mxu0 0.0
      %917 = vmatpush1.msra.mxu0 0.0
      %918 = vmatprep.mubr.f32.mxu0 0.0
      %919 = vmatmul.mubr.f32.gmra.mrb[0].mxu0 %v843
      %v920 = vpop.f32.mrb[0].mxu0
      %v921 = vadd.f32 %v840, %v920
      %v922 = vpop.f32.mrb[0].mxu0
      %923 = vmatprep.mubr.f32.mxu0 0.0
      %924 = vmatmul.mubr.f32.gmra.mrb[0].mxu0 %v846
      %v925 = vpop.f32.mrb[0].mxu0
      %v926 = vadd.f32 %v840, %v925
      %v927 = vpop.f32.mrb[0].mxu0
      %928 = vmatprep.mubr.f32.mxu0 0.0
      %929 = vmatmul.mubr.f32.gmra.mrb[0].mxu0 %v849
      %v930 = vpop.f32.mrb[0].mxu0
      %v931 = vadd.f32 %v840, %v930
      %v932 = vpop.f32.mrb[0].mxu0
      %933 = vmatprep.mubr.f32.mxu0 0.0
      %934 = vmatmul.mubr.f32.gmra.mrb[0].mxu0 %v852
      %v935 = vpop.f32.mrb[0].mxu0
      %v936 = vadd.f32 %v840, %v935
      %v937 = vpop.f32.mrb[0].mxu0
      %938 = vdwg.mxu0
      %v939 = vmax.f32 %v921, 0.0
      %v940 = vmax.f32 %v926, 0.0
      %v941 = vmax.f32 %v931, 0.0
      %v942 = vmax.f32 %v936, 0.0
      %v943 = vld [vmem:[%s7] sm:$0xff]
      %v944 = vld [vmem:[%s7 + $0x8] sm:$0xff]
      %v945 = vld [vmem:[%s7 + $0x10] sm:$0xff]
      %v946 = vld [vmem:[%s7 + $0x18] sm:$0xff]
      %v947 = vld [vmem:[%s8] sm:$0x1]
      %v949 = vlaneseq
      %v950 = vshrl.u32 %v949, 7
      %v951 = vsub.s32 0, %v950
      %v952 = vrot.slane %v947, %v951
      %954 = vmatprep.subr.mxu0 0.0
      %955 = vmatpush1.msra.mxu0 %v943
      %956 = vmatprep.subr.mxu0 0.0
      %957 = vmatpush1.msra.mxu0 %v944
      %958 = vmatprep.subr.mxu0 0.0
      %959 = vmatpush1.msra.mxu0 %v945
      %960 = vmatprep.subr.mxu0 0.0
      %961 = vmatpush1.msra.mxu0 %v946
      %962 = vmatprep.subr.mxu0 0.0
      %963 = vmatpush1.msra.mxu0 0.0
      %964 = vmatprep.subr.mxu0 0.0
      %965 = vmatpush1.msra.mxu0 0.0
      %966 = vmatprep.subr.mxu0 0.0
      %967 = vmatpush1.msra.mxu0 0.0
      %968 = vmatprep.subr.mxu0 0.0
      %969 = vmatpush1.msra.mxu0 0.0
      %970 = vmatprep.subr.mxu0 0.0
      %971 = vmatpush1.msra.mxu0 0.0
      %972 = vmatprep.subr.mxu0 0.0
      %973 = vmatpush1.msra.mxu0 0.0
      %974 = vmatprep.subr.mxu0 0.0
      %975 = vmatpush1.msra.mxu0 0.0
      %976 = vmatprep.subr.mxu0 0.0
      %977 = vmatpush1.msra.mxu0 0.0
      %978 = vmatprep.subr.mxu0 0.0
      %979 = vmatpush1.msra.mxu0 0.0
      %980 = vmatprep.subr.mxu0 0.0
      %981 = vmatpush1.msra.mxu0 0.0
      %982 = vmatprep.subr.mxu0 0.0
      %983 = vmatpush1.msra.mxu0 0.0
      %984 = vmatprep.subr.mxu0 0.0
      %985 = vmatpush1.msra.mxu0 0.0
      %986 = vmatprep.subr.mxu0 0.0
      %987 = vmatpush1.msra.mxu0 0.0
      %988 = vmatprep.subr.mxu0 0.0
      %989 = vmatpush1.msra.mxu0 0.0
      %990 = vmatprep.subr.mxu0 0.0
      %991 = vmatpush1.msra.mxu0 0.0
      %992 = vmatprep.subr.mxu0 0.0
      %993 = vmatpush1.msra.mxu0 0.0
      %994 = vmatprep.subr.mxu0 0.0
      %995 = vmatpush1.msra.mxu0 0.0
      %996 = vmatprep.subr.mxu0 0.0
      %997 = vmatpush1.msra.mxu0 0.0
      %998 = vmatprep.subr.mxu0 0.0
      %999 = vmatpush1.msra.mxu0 0.0
      %1000 = vmatprep.subr.mxu0 0.0
      %1001 = vmatpush1.msra.mxu0 0.0
      %1002 = vmatprep.subr.mxu0 0.0
      %1003 = vmatpush1.msra.mxu0 0.0
      %1004 = vmatprep.subr.mxu0 0.0
      %1005 = vmatpush1.msra.mxu0 0.0
      %1006 = vmatprep.subr.mxu0 0.0
      %1007 = vmatpush1.msra.mxu0 0.0
      %1008 = vmatprep.subr.mxu0 0.0
      %1009 = vmatpush1.msra.mxu0 0.0
      %1010 = vmatprep.subr.mxu0 0.0
      %1011 = vmatpush1.msra.mxu0 0.0
      %1012 = vmatprep.subr.mxu0 0.0
      %1013 = vmatpush1.msra.mxu0 0.0
      %1014 = vmatprep.subr.mxu0 0.0
      %1015 = vmatpush1.msra.mxu0 0.0
      %1016 = vmatprep.subr.mxu0 0.0
      %1017 = vmatpush1.msra.mxu0 0.0
      %1018 = vmatprep.mubr.f32.mxu0 0.0
      %1019 = vmatmul.mubr.f32.gmra.mrb[0].mxu0 %v843
      %v1020 = vpop.f32.mrb[0].mxu0
      %v1021 = vadd.f32 %v952, %v1020
      %v1022 = vpop.f32.mrb[0].mxu0
      %1023 = vmatprep.mubr.f32.mxu0 0.0
      %1024 = vmatmul.mubr.f32.gmra.mrb[0].mxu0 %v846
      %v1025 = vpop.f32.mrb[0].mxu0
      %v1026 = vadd.f32 %v952, %v1025
      %v1027 = vpop.f32.mrb[0].mxu0
      %1028 = vmatprep.mubr.f32.mxu0 0.0
      %1029 = vmatmul.mubr.f32.gmra.mrb[0].mxu0 %v849
      %v1030 = vpop.f32.mrb[0].mxu0
      %v1031 = vadd.f32 %v952, %v1030
      %v1032 = vpop.f32.mrb[0].mxu0
      %1033 = vmatprep.mubr.f32.mxu0 0.0
      %1034 = vmatmul.mubr.f32.gmra.mrb[0].mxu0 %v852
      %v1035 = vpop.f32.mrb[0].mxu0
      %v1036 = vadd.f32 %v952, %v1035
      %v1037 = vpop.f32.mrb[0].mxu0
      %1038 = vdwg.mxu0
      %v1039 = vmax.f32 %v1021, 0.0
      %v1040 = vmax.f32 %v1026, 0.0
      %v1041 = vmax.f32 %v1031, 0.0
      %v1042 = vmax.f32 %v1036, 0.0
      %vm1043 = vcmask 31744
      %1044 = vst.msk [vmem:[%s375] sm:$0xff] %vm1043, %v939
      %1045 = vst.msk [vmem:[%s375 + $0x8] sm:$0xff] %vm1043, %v940
      %1046 = vst.msk [vmem:[%s375 + $0x10] sm:$0xff] %vm1043, %v941
      %1047 = vst.msk [vmem:[%s375 + $0x18] sm:$0xff] %vm1043, %v942
      %v1048 = vmax.f32 %v1039, 0.0
      %v1049 = vmax.f32 %v1040, 0.0
      %v1050 = vmax.f32 %v1041, 0.0
      %v1051 = vmax.f32 %v1042, 0.0
      %vm1052 = vcmp.ne.f32.partialorder %v1039, %v1039
      %vm1053 = vcmp.ne.f32.partialorder %v1040, %v1040
      %vm1054 = vcmp.ne.f32.partialorder %v1041, %v1041
      %vm1055 = vcmp.ne.f32.partialorder %v1042, %v1042
      %v1056 = vadd.f32 %v1039, 0.0
      %v1057 = vadd.f32 %v1040, 0.0
      %v1058 = vadd.f32 %v1041, 0.0
      %v1059 = vadd.f32 %v1042, 0.0
      %v1060 = vand.u32 2147483647, %v1039
      %v1061 = vand.u32 2147483647, %v1040
      %v1062 = vand.u32 2147483647, %v1041
      %v1063 = vand.u32 2147483647, %v1042
      %v1064 = vsub.f32 0.0, %v1060
      %v1065 = vsub.f32 0.0, %v1061
      %v1066 = vsub.f32 0.0, %v1062
      %v1067 = vsub.f32 0.0, %v1063
      %v1068 = vmul.f32 %v1064, 1.442695
      %v1069 = vpow.pop %v1068
      %v1070 = vmul.f32 %v1065, 1.442695
      %v1071 = vpow.pop %v1070
      %v1072 = vmul.f32 %v1066, 1.442695
      %v1073 = vpow.pop %v1072
      %v1074 = vmul.f32 %v1067, 1.442695
      %v1075 = vpow.pop %v1074
      %v1076 = vadd.f32 %v1069, 1.0
      %v1077 = vlog2.pop %v1076
      %v1078 = vmul.f32 %v1077, 0.6931472
      %v1079 = vmul.f32 -0.5, %v1069
      %v1080 = vadd.f32 %v1079, 1.0
      %v1081 = vmul.f32 %v1080, %v1069
      %v1082 = vand.u32 2147483647, %v1069
      %vm1083 = vcmp.lt.f32.partialorder %v1082, 0.0004427343
      %v1084 = vsel %vm1083, %v1081, %v1078
      %v1085 = vadd.f32 %v1071, 1.0
      %v1086 = vlog2.pop %v1085
      %v1087 = vmul.f32 %v1086, 0.6931472
      %v1088 = vmul.f32 -0.5, %v1071
      %v1089 = vadd.f32 %v1088, 1.0
      %v1090 = vmul.f32 %v1089, %v1071
      %v1091 = vand.u32 2147483647, %v1071
      %vm1092 = vcmp.lt.f32.partialorder %v1091, 0.0004427343
      %v1093 = vsel %vm1092, %v1090, %v1087
      %v1094 = vadd.f32 %v1073, 1.0
      %v1095 = vlog2.pop %v1094
      %v1096 = vmul.f32 %v1095, 0.6931472
      %v1097 = vmul.f32 -0.5, %v1073
      %v1098 = vadd.f32 %v1097, 1.0
      %v1099 = vmul.f32 %v1098, %v1073
      %v1100 = vand.u32 2147483647, %v1073
      %vm1101 = vcmp.lt.f32.partialorder %v1100, 0.0004427343
      %v1102 = vsel %vm1101, %v1099, %v1096
      %v1103 = vadd.f32 %v1075, 1.0
      %v1104 = vlog2.pop %v1103
      %v1105 = vmul.f32 %v1104, 0.6931472
      %v1106 = vmul.f32 -0.5, %v1075
      %v1107 = vadd.f32 %v1106, 1.0
      %v1108 = vmul.f32 %v1107, %v1075
      %v1109 = vand.u32 2147483647, %v1075
      %vm1110 = vcmp.lt.f32.partialorder %v1109, 0.0004427343
      %v1111 = vsel %vm1110, %v1108, %v1105
      %v1112 = vadd.f32 %v1048, %v1084
      %v1113 = vadd.f32 %v1049, %v1093
      %v1114 = vadd.f32 %v1050, %v1102
      %v1115 = vadd.f32 %v1051, %v1111
      %v1116 = vsel %vm1052, %v1056, %v1112
      %v1117 = vsel %vm1053, %v1057, %v1113
      %v1118 = vsel %vm1054, %v1058, %v1114
      %v1119 = vsel %vm1055, %v1059, %v1115
      %1120 = vst.msk [vmem:[%s382] sm:$0xff] %vm1043, %v1116
      %1121 = vst.msk [vmem:[%s382 + $0x8] sm:$0xff] %vm1043, %v1117
      %1122 = vst.msk [vmem:[%s382 + $0x10] sm:$0xff] %vm1043, %v1118
      %1123 = vst.msk [vmem:[%s382 + $0x18] sm:$0xff] %vm1043, %v1119
      %s1124 = smul.u32 2, %s22
      %p1125 = scmp.lt.s32.totalorder %s1124, 3
      %s1126 = scalar_select %p1125, %s1124, 3
      %s1127 = smul.addr %s1126, 2
      %s1128 = smul.addr %s1127, 8
      %s1129 = scalar_lea.vmem %s9, %s1128
      %s1130 = smul.u32 2, %s22
      %p1131 = scmp.lt.s32.totalorder %s1130, 3
      %s1132 = scalar_select %p1131, %s1130, 3
      %s1133 = smul.addr %s1132, 2
      %s1134 = smul.addr %s1133, 8
      %s1135 = scalar_lea.vmem %s10, %s1134
      // Predicated region
      $region57: #{tpu_custom_call.1} parent=55 // pred_check
        %p1136 = pneg %p234
      $region58: #{tpu_custom_call.1} parent=55 // pred_check_branch
        %1138 = sbr.rel (%p1136) target = $region60
      $region59: #{tpu_custom_call.1} parent=55 // pred_region
        %s1139 = smul.u32 2, %s22
      $region60: #{tpu_custom_call.1} parent=55 // pred_fallthru
        _
      // Predicated region
      $region61: #{tpu_custom_call.1} parent=55 // pred_check
        %p1140 = pneg %p260
      $region62: #{tpu_custom_call.1} parent=55 // pred_check_branch
        %1142 = sbr.rel (%p1140) target = $region64
      $region63: #{tpu_custom_call.1} parent=55 // pred_region
        %s1143 = smul.u32 2, %s22
      $region64: #{tpu_custom_call.1} parent=55 // pred_fallthru
        _
    $region56: #{tpu_custom_call.1} parent=5 // pred_fallthru
      _
    %p1144 = scmp.le.s32.totalorder 2, %s17
    // Predicated region
    $region65: #{tpu_custom_call.1} parent=5 // pred_check
      %p1145 = pneg %p1144
    $region66: #{tpu_custom_call.1} parent=5 // pred_check_branch
      %1147 = sbr.rel (%p1145) target = $region68
    $region67: #{tpu_custom_call.1} parent=5 // pred_region
      %s1148 = ssub.s32 %s17, 2
      // Predicated region
      $region69: #{tpu_custom_call.1} parent=67 // pred_check
        %p1149 = pneg %p240
      $region70: #{tpu_custom_call.1} parent=67 // pred_check_branch
        %1151 = sbr.rel (%p1149) target = $region72
      $region71: #{tpu_custom_call.1} parent=67 // pred_region
        %s1152 = smul.u32 2, %s23
        %p1153 = scmp.lt.s32.totalorder %s1152, 3
        %s1154 = scalar_select %p1153, %s1152, 3
        %s1155 = smul.addr %s1154, 2
        %s1156 = smul.addr %s1155, 8
        %s1157 = scalar_lea.vmem %s9, %s1156
      $region72: #{tpu_custom_call.1} parent=67 // pred_fallthru
        _
      // Predicated region
      $region73: #{tpu_custom_call.1} parent=67 // pred_check
        %p1158 = pneg %p266
      $region74: #{tpu_custom_call.1} parent=67 // pred_check_branch
        %1160 = sbr.rel (%p1158) target = $region76
      $region75: #{tpu_custom_call.1} parent=67 // pred_region
        %s1161 = smul.u32 2, %s23
        %p1162 = scmp.lt.s32.totalorder %s1161, 3
        %s1163 = scalar_select %p1162, %s1161, 3
        %s1164 = smul.addr %s1163, 2
        %s1165 = smul.addr %s1164, 8
        %s1166 = scalar_lea.vmem %s10, %s1165
      $region76: #{tpu_custom_call.1} parent=67 // pred_fallthru
        _
    $region68: #{tpu_custom_call.1} parent=5 // pred_fallthru
      _
  $region6: #{tpu_custom_call.1} parent=0 // loop_footer
    %s21 = sadd.s32 1, %s17
  $region7: #{tpu_custom_call.1} parent=0 // loop_footer_branch
    %16 = sbr.rel target = $region3
  $region8: #{tpu_custom_call.1} parent=0 // loop_exit
    _

</llo_original>
